<compile_context>
chip_gen: v7x
topology: tpu7x:2x2x1
jax: 0.10.0
libtpu: 0.0.40
codegen_flags: <defaults>
</compile_context>

<pallas_src>
import functools
import math

import jax
import jax.numpy as jnp
from jax import lax
from jax.experimental import pallas as pl
from jax.experimental.pallas import tpu as pltpu

_EPS = 1e-5


# ----------------------------- kernels ------------------------------------


def _ln2x_plain_kernel(x_ref, w1_ref, b1_ref, w2_ref, b2_ref, o_ref):
    """x_ref: (TR, C); params: (1, C); o_ref: (TR, 2C)."""
    x = x_ref[...].astype(jnp.float32)
    c = x.shape[-1]
    inv_c = 1.0 / c
    s1 = jnp.sum(x, axis=-1, keepdims=True)
    s2 = jnp.sum(x * x, axis=-1, keepdims=True)
    mu = s1 * inv_c
    var = jnp.maximum(s2 * inv_c - mu * mu, 0.0)
    xh = (x - mu) * lax.rsqrt(var + _EPS)

    w1 = w1_ref[...].astype(jnp.float32)
    b1 = b1_ref[...].astype(jnp.float32)
    w2 = w2_ref[...].astype(jnp.float32)
    b2 = b2_ref[...].astype(jnp.float32)

    # Two half-width stores (static slices) -> no 2C-wide f32 concat live at
    # once; for C % 128 == 0 both stores are lane-aligned and unmasked.
    o_ref[:, :c] = (xh * w1 + b1).astype(o_ref.dtype)
    o_ref[:, c:] = (xh * w2 + b2).astype(o_ref.dtype)


def _ln2x_folded_kernel(c, x_ref, p_ref, d_ref, w_ref, b_ref, o_ref):
    """Lane-folded path for small C.

    x_ref: (TR, L) with L = G*C = 128 (G rows folded into the lane axis)
    p_ref: (L, L)  same-segment one-hot -> segmented sum broadcast
    d_ref: (L, 2L) duplicate/interleave one-hot -> [xh_g | xh_g] per row g
    w_ref/b_ref: (1, 2L) = tile(concat(w1, w2), G)
    o_ref: (TR, 2L)
    """
    x = x_ref[...].astype(jnp.float32)
    p = p_ref[...]
    inv_c = 1.0 / c
    # Segmented reductions on the otherwise-idle MXU; result already broadcast
    # back to every lane of its segment.
    s1 = jnp.dot(x, p, preferred_element_type=jnp.float32)
    s2 = jnp.dot(x * x, p, preferred_element_type=jnp.float32)
    mu = s1 * inv_c
    var = jnp.maximum(s2 * inv_c - mu * mu, 0.0)
    xh = (x - mu) * lax.rsqrt(var + _EPS)

    # Duplicate each folded row's xh into its two adjacent C-wide output slots,
    # then apply the pre-tiled affine params: one full-lane, unmasked store.
    out = jnp.dot(xh, d_ref[...], preferred_element_type=jnp.float32)
    out = out * w_ref[...] + b_ref[...]
    o_ref[...] = out.astype(o_ref.dtype)


# ----------------------------- sizing helpers ------------------------------


def _default_vmem_limit_bytes():
    # v5e/v6e: 128 MiB VMEM per TensorCore; v7x: 64 MiB.  Conservative default
    # if the query fails.
    cap = 64 * 1024 * 1024
    try:
        cap = getattr(pltpu.get_tpu_info(), "vmem_capacity_bytes", cap)
    except Exception:  # pragma: no cover - best-effort hardware query
        pass
    return int(cap * 0.55)


def _pick_row_tile(rows_view, lane_in, lane_out, in_bytes, out_bytes, budget_bytes):
    """Largest 8-aligned row tile whose VMEM footprint fits the budget.

    Accounts for double-buffered in/out blocks plus the f32 in-kernel
    intermediates (~3 input-width + ~2 output-width arrays).
    """
    per_row = (2 * lane_in * in_bytes                 # input block (dbl-buffered)
               + 2 * lane_out * out_bytes             # output block (dbl-buffered)
               + 4 * (3 * lane_in + 2 * lane_out))    # f32 intermediates
    tile = max(8, (budget_bytes // max(per_row, 1) // 8) * 8)
    # Don't use a tile larger than the problem needs.
    if rows_view >= 8:
        tile = min(tile, max(8, (rows_view // 8) * 8))
    else:
        tile = 8
    return min(tile, 16384)


# ----------------------------- wrapper -------------------------------------


def with_bias_layernorm_2x(x, weight1, bias1, weight2, bias2, *,
                           row_tile=None, out_dtype=None,
                           vmem_limit_bytes=None):
    """x: (..., C) -> (..., 2*C). weight*/bias*: (C,)."""
    orig_shape = x.shape
    C = orig_shape[-1]
    rows = math.prod(orig_shape[:-1]) if len(orig_shape) > 1 else 1
    out_dtype = x.dtype if out_dtype is None else out_dtype

    if vmem_limit_bytes is None:
        vmem_limit_bytes = _default_vmem_limit_bytes()
    budget = int(vmem_limit_bytes * 0.7)

    in_bytes = jnp.dtype(x.dtype).itemsize
    out_bytes = jnp.dtype(out_dtype).itemsize

    x2d = x.reshape(rows, C)

    # Lane-folding is applicable when C divides 128 and the rows pack evenly.
    fold = (C < 128) and (128 % C == 0) and (rows % (128 // C) == 0)

    if fold:
        G = 128 // C
        L = G * C  # == 128
        rows_view = rows // G
        xv = x2d.reshape(rows_view, L)  # contiguous reshape, no HBM copy

        seg = jnp.arange(L, dtype=jnp.int32) // C
        p_mat = (seg[:, None] == seg[None, :]).astype(jnp.float32)        # (L, L)

        idx = jnp.arange(L, dtype=jnp.int32)
        g = idx // C
        c_in_seg = idx % C
        cols1 = 2 * g * C + c_in_seg
        cols2 = cols1 + C
        j = jnp.arange(2 * L, dtype=jnp.int32)
        d_mat = ((j[None, :] == cols1[:, None]) |
                 (j[None, :] == cols2[:, None])).astype(jnp.float32)      # (L, 2L)

        wb = jnp.concatenate([weight1.reshape(-1), weight2.reshape(-1)])
        bb = jnp.concatenate([bias1.reshape(-1), bias2.reshape(-1)])
        w_fold = jnp.tile(wb, G).reshape(1, 2 * L).astype(jnp.float32)
        b_fold = jnp.tile(bb, G).reshape(1, 2 * L).astype(jnp.float32)

        if row_tile is None:
            row_tile = _pick_row_tile(rows_view, L, 2 * L, in_bytes, out_bytes, budget)
        grid = (pl.cdiv(rows_view, row_tile),)

        out = pl.pallas_call(
            functools.partial(_ln2x_folded_kernel, C),
            out_shape=jax.ShapeDtypeStruct((rows_view, 2 * L), out_dtype),
            grid_spec=pltpu.PrefetchScalarGridSpec(
                num_scalar_prefetch=0,
                grid=grid,
                in_specs=[
                    pl.BlockSpec((row_tile, L), lambda i: (i, 0)),
                    pl.BlockSpec((L, L), lambda i: (0, 0)),
                    pl.BlockSpec((L, 2 * L), lambda i: (0, 0)),
                    pl.BlockSpec((1, 2 * L), lambda i: (0, 0)),
                    pl.BlockSpec((1, 2 * L), lambda i: (0, 0)),
                ],
                out_specs=pl.BlockSpec((row_tile, 2 * L), lambda i: (i, 0)),
            ),
            compiler_params=pltpu.CompilerParams(
                dimension_semantics=("parallel",),
                vmem_limit_bytes=vmem_limit_bytes,
            ),
        )(xv, p_mat, d_mat, w_fold, b_fold)
        out = out.reshape(rows, 2 * C)  # contiguous reshape, no HBM copy
    else:
        if row_tile is None:
            row_tile = _pick_row_tile(rows, C, 2 * C, in_bytes, out_bytes, budget)
        grid = (pl.cdiv(rows, row_tile),)

        w1 = weight1.reshape(1, C).astype(jnp.float32)
        b1 = bias1.reshape(1, C).astype(jnp.float32)
        w2 = weight2.reshape(1, C).astype(jnp.float32)
        b2 = bias2.reshape(1, C).astype(jnp.float32)

        out = pl.pallas_call(
            _ln2x_plain_kernel,
            out_shape=jax.ShapeDtypeStruct((rows, 2 * C), out_dtype),
            grid_spec=pltpu.PrefetchScalarGridSpec(
                num_scalar_prefetch=0,
                grid=grid,
                in_specs=[
                    pl.BlockSpec((row_tile, C), lambda i: (i, 0)),
                    pl.BlockSpec((1, C), lambda i: (0, 0)),
                    pl.BlockSpec((1, C), lambda i: (0, 0)),
                    pl.BlockSpec((1, C), lambda i: (0, 0)),
                    pl.BlockSpec((1, C), lambda i: (0, 0)),
                ],
                out_specs=pl.BlockSpec((row_tile, 2 * C), lambda i: (i, 0)),
            ),
            compiler_params=pltpu.CompilerParams(
                dimension_semantics=("parallel",),
                vmem_limit_bytes=vmem_limit_bytes,
            ),
        )(x2d, w1, b1, w2, b2)

    return out.reshape(*orig_shape[:-1], 2 * C)


# ----------------------------- reference & demo -----------------------------


def _reference(x, w1, b1, w2, b2):
    mu = jnp.mean(x, axis=-1, keepdims=True)
    var = jnp.mean((x - mu) ** 2, axis=-1, keepdims=True)
    xh = (x - mu) / jnp.sqrt(var + 1e-5)
    return jnp.concatenate([xh * w1 + b1, xh * w2 + b2], axis=-1)


if __name__ == "__main__":
    key = jax.random.PRNGKey(0)
    k1, k2, k3 = jax.random.split(key, 3)

    # normalized_shape = 32, batch=2, seq=64  -> lane-folded path (G=4).
    B, S, C = 2, 64, 32
    x = jax.random.normal(k1, (B, S, C), dtype=jnp.float32)
    weight1 = jnp.ones((C,), dtype=jnp.float32)
    weight2 = jnp.ones((C,), dtype=jnp.float32) * 1.5
    bias1 = jnp.full((C,), 0.1, dtype=jnp.float32)
    bias2 = jnp.full((C,), -0.2, dtype=jnp.float32)

    out = jax.block_until_ready(
        with_bias_layernorm_2x(x, weight1, bias1, weight2, bias2))
    ref = _reference(x, weight1, bias1, weight2, bias2)
    assert out.shape == (B, S, 2 * C), out.shape
    assert jnp.allclose(out, ref, atol=1e-4, rtol=1e-4), "folded-path mismatch"

    # Row count not divisible by G -> plain path + partial trailing block.
    x_odd = jax.random.normal(k2, (3, 37, C), dtype=jnp.float32)
    out_odd = jax.block_until_ready(
        with_bias_layernorm_2x(x_odd, weight1, bias1, weight2, bias2))
    ref_odd = _reference(x_odd, weight1, bias1, weight2, bias2)
    assert out_odd.shape == (3, 37, 2 * C), out_odd.shape
    assert jnp.allclose(out_odd, ref_odd, atol=1e-4, rtol=1e-4), "plain-path mismatch"

    # 128-aligned C -> plain path with lane-dense, unmasked half stores.
    C2 = 128
    x_big = jax.random.normal(k3, (2, 16, C2), dtype=jnp.float32)
    w1b = jnp.linspace(0.5, 1.5, C2, dtype=jnp.float32)
    w2b = jnp.linspace(1.5, 0.5, C2, dtype=jnp.float32)
    b1b = jnp.full((C2,), 0.05, dtype=jnp.float32)
    b2b = jnp.full((C2,), -0.05, dtype=jnp.float32)
    out_big = jax.block_until_ready(
        with_bias_layernorm_2x(x_big, w1b, b1b, w2b, b2b))
    ref_big = _reference(x_big, w1b, b1b, w2b, b2b)
    assert out_big.shape == (2, 16, 2 * C2), out_big.shape
    assert jnp.allclose(out_big, ref_big, atol=1e-4, rtol=1e-4), "aligned-path mismatch"

    print("KERNEL_OK")
</pallas_src>

<mosaic_0001>
module attributes {stable_mosaic.version = 11 : i64} {
  func.func @_ln2x_folded_kernel(%arg0: i32, %arg1: memref<32x128xf32, #tpu.memory_space<vmem>>, %arg2: memref<128x128xf32, #tpu.memory_space<vmem>>, %arg3: memref<128x256xf32, #tpu.memory_space<vmem>>, %arg4: memref<1x256xf32, #tpu.memory_space<vmem>>, %arg5: memref<1x256xf32, #tpu.memory_space<vmem>>, %arg6: memref<32x256xf32, #tpu.memory_space<vmem>>) attributes {dimension_semantics = [#tpu.dimension_semantics<parallel>], iteration_bounds = array<i64: 1>, scalar_prefetch = 0 : i64, scratch_operands = 0 : i64, tpu.core_type = #tpu.core_type<tc>, window_params = [{transform_indices = @transform_0, window_bounds = array<i64: 32, 128>}, {pipeline_mode = #tpu.pipeline_mode<synchronous>, transform_indices = @transform_1, window_bounds = array<i64: 128, 128>}, {pipeline_mode = #tpu.pipeline_mode<synchronous>, transform_indices = @transform_2, window_bounds = array<i64: 128, 256>}, {pipeline_mode = #tpu.pipeline_mode<synchronous>, transform_indices = @transform_3, window_bounds = array<i64: 1, 256>}, {pipeline_mode = #tpu.pipeline_mode<synchronous>, transform_indices = @transform_4, window_bounds = array<i64: 1, 256>}, {transform_indices = @transform_5, window_bounds = array<i64: 32, 256>}]} {
    %c0 = arith.constant 0 : index
    %c0_0 = arith.constant 0 : index
    %0 = vector.load %arg1[%c0, %c0_0] : memref<32x128xf32, #tpu.memory_space<vmem>>, vector<32x128xf32>
    %c0_1 = arith.constant 0 : index
    %c0_2 = arith.constant 0 : index
    %1 = vector.load %arg2[%c0_1, %c0_2] : memref<128x128xf32, #tpu.memory_space<vmem>>, vector<128x128xf32>
    %cst = arith.constant dense<0.000000e+00> : vector<32x128xf32>
    %2 = tpu.matmul %0, %1, %cst {dimension_numbers = #tpu.dot_dimension_numbers<[1], [0], [0], [1], [0, 0, 1, 1], [], []>} : vector<32x128xf32>, vector<128x128xf32>, vector<32x128xf32> -> vector<32x128xf32>
    %3 = arith.mulf %0, %0 : vector<32x128xf32>
    %cst_3 = arith.constant dense<0.000000e+00> : vector<32x128xf32>
    %4 = tpu.matmul %3, %1, %cst_3 {dimension_numbers = #tpu.dot_dimension_numbers<[1], [0], [0], [1], [0, 0, 1, 1], [], []>} : vector<32x128xf32>, vector<128x128xf32>, vector<32x128xf32> -> vector<32x128xf32>
    %cst_4 = arith.constant 3.125000e-02 : f32
    %5 = vector.broadcast %cst_4 : f32 to vector<32x128xf32>
    %6 = arith.mulf %2, %5 : vector<32x128xf32>
    %cst_5 = arith.constant 3.125000e-02 : f32
    %7 = vector.broadcast %cst_5 : f32 to vector<32x128xf32>
    %8 = arith.mulf %4, %7 : vector<32x128xf32>
    %9 = arith.mulf %6, %6 : vector<32x128xf32>
    %10 = arith.subf %8, %9 : vector<32x128xf32>
    %cst_6 = arith.constant 0.000000e+00 : f32
    %11 = vector.broadcast %cst_6 : f32 to vector<32x128xf32>
    %12 = arith.maximumf %10, %11 : vector<32x128xf32>
    %13 = arith.subf %0, %6 : vector<32x128xf32>
    %cst_7 = arith.constant 9.99999974E-6 : f32
    %14 = vector.broadcast %cst_7 : f32 to vector<32x128xf32>
    %15 = arith.addf %12, %14 : vector<32x128xf32>
    %16 = math.rsqrt %15 : vector<32x128xf32>
    %17 = arith.mulf %13, %16 : vector<32x128xf32>
    %c0_8 = arith.constant 0 : index
    %c0_9 = arith.constant 0 : index
    %18 = vector.load %arg3[%c0_8, %c0_9] : memref<128x256xf32, #tpu.memory_space<vmem>>, vector<128x256xf32>
    %cst_10 = arith.constant dense<0.000000e+00> : vector<32x256xf32>
    %19 = tpu.matmul %17, %18, %cst_10 {dimension_numbers = #tpu.dot_dimension_numbers<[1], [0], [0], [1], [0, 0, 1, 1], [], []>} : vector<32x128xf32>, vector<128x256xf32>, vector<32x256xf32> -> vector<32x256xf32>
    %c0_11 = arith.constant 0 : index
    %c0_12 = arith.constant 0 : index
    %20 = vector.load %arg4[%c0_11, %c0_12] : memref<1x256xf32, #tpu.memory_space<vmem>>, vector<1x256xf32>
    %21 = vector.broadcast %20 : vector<1x256xf32> to vector<32x256xf32>
    %22 = arith.mulf %19, %21 : vector<32x256xf32>
    %c0_13 = arith.constant 0 : index
    %c0_14 = arith.constant 0 : index
    %23 = vector.load %arg5[%c0_13, %c0_14] : memref<1x256xf32, #tpu.memory_space<vmem>>, vector<1x256xf32>
    %24 = vector.broadcast %23 : vector<1x256xf32> to vector<32x256xf32>
    %25 = arith.addf %22, %24 : vector<32x256xf32>
    %c0_15 = arith.constant 0 : index
    %c0_16 = arith.constant 0 : index
    %26 = vector.load %arg6[%c0_15, %c0_16] : memref<32x256xf32, #tpu.memory_space<vmem>>, vector<32x256xf32>
    tpu.vector_store %arg6[%c0_15, %c0_16], %25 {strides = array<i32>} : memref<32x256xf32, #tpu.memory_space<vmem>>, vector<32x256xf32>,
    return
  }
  func.func @transform_0(%arg0: i32) -> (i32, i32) {
    %c0_i32 = arith.constant 0 : i32
    %c0_i32_0 = arith.constant 0 : i32
    return %arg0, %c0_i32 : i32, i32
  }
  func.func @transform_1(%arg0: i32) -> (i32, i32) {
    %c0_i32 = arith.constant 0 : i32
    %c0_i32_0 = arith.constant 0 : i32
    %c0_i32_1 = arith.constant 0 : i32
    return %c0_i32, %c0_i32_0 : i32, i32
  }
  func.func @transform_2(%arg0: i32) -> (i32, i32) {
    %c0_i32 = arith.constant 0 : i32
    %c0_i32_0 = arith.constant 0 : i32
    %c0_i32_1 = arith.constant 0 : i32
    return %c0_i32, %c0_i32_0 : i32, i32
  }
  func.func @transform_3(%arg0: i32) -> (i32, i32) {
    %c0_i32 = arith.constant 0 : i32
    %c0_i32_0 = arith.constant 0 : i32
    %c0_i32_1 = arith.constant 0 : i32
    return %c0_i32, %c0_i32_0 : i32, i32
  }
  func.func @transform_4(%arg0: i32) -> (i32, i32) {
    %c0_i32 = arith.constant 0 : i32
    %c0_i32_0 = arith.constant 0 : i32
    %c0_i32_1 = arith.constant 0 : i32
    return %c0_i32, %c0_i32_0 : i32, i32
  }
  func.func @transform_5(%arg0: i32) -> (i32, i32) {
    %c0_i32 = arith.constant 0 : i32
    %c0_i32_0 = arith.constant 0 : i32
    return %arg0, %c0_i32 : i32, i32
  }
}

</mosaic_0001>

<llo_original>
// kernel: tpu_custom_call.1
$region0: #{tpu_custom_call.1}
  #allocation0 [shape = 'u32[]', space=smem, size = 0x4, offset = 0x4, fixed_abs, tag = 'smem constant byte address 0x4 - core index']
  #allocation1 [shape = 'u32[144,128]{1,0:T(1,128)}', space=vmem, size = 0x12000, scoped, tag = 'internal scratch']
  %s0 = inlined_call_operand.hbm [shape: f32[32,128], index: 0, kind: input, shape index: {}]
  %s1 = inlined_call_operand.hbm [shape: f32[128,128], index: 1, kind: input, shape index: {}]
  %s2 = inlined_call_operand.hbm [shape: f32[128,256], index: 2, kind: input, shape index: {}]
  %s3 = inlined_call_operand.vmem [shape: f32[1,256], index: 3, kind: input, shape index: {}]
  %s4 = inlined_call_operand.vmem [shape: f32[1,256], index: 4, kind: input, shape index: {}]
  %s5 = inlined_call_operand.hbm [shape: f32[32,256], index: 5, kind: output, shape index: {}]
  %s6 = sld [smem:[#allocation0]]
  $region42: #{tpu_custom_call.1} parent=0
    _
  %s8 = ssub.s32 1, %s6
  %s9 = scalar_select 0, %s8, %s6
  $region1: #{tpu_custom_call.1} parent=0
    #allocation2 [shape = 'u8[16384]{0}', space=vmem, size = 0x4000, scoped, tag = 'input window, operand 0, single buffered']
    #allocation3 [shape = 's32[1]{0}', space=sflag, size = 0x4, scoped, tag = 'scoped memory for tpu_custom_call.1']
    #allocation4 [shape = 's32[1]{0}', space=sflag, size = 0x4, scoped, tag = 'scoped memory for tpu_custom_call.1']
    #allocation5 [shape = 'u8[65536]{0}', space=vmem, size = 0x10000, scoped, tag = 'input window, operand 1, single buffered']
    #allocation6 [shape = 's32[1]{0}', space=sflag, size = 0x4, scoped, tag = 'scoped memory for tpu_custom_call.1']
    #allocation7 [shape = 'u8[131072]{0}', space=vmem, size = 0x20000, scoped, tag = 'input window, operand 2, single buffered']
    #allocation8 [shape = 'u8[32768]{0}', space=vmem, size = 0x8000, scoped, tag = 'output window, operand 0, single buffered']
    %10 = vsyncpa [#allocation3], 0
    %11 = vsyncpa [#allocation6], 0
    %12 = vsyncpa [#allocation4], 0
    // Predicated region
    $region2: #{tpu_custom_call.1} parent=1 // pred_check
      _
    $region3: #{tpu_custom_call.1} parent=1 // pred_check_branch
      %14 = sbr.rel (0) target = $region5
    $region4: #{tpu_custom_call.1} parent=1 // pred_region
      %s16 = ssub.s32 512, 512
      %17 = vsyncadd [#allocation3], %s16
      %s18 = sshll.u32 [#allocation2], 4
      %s19 = int_to_ptr.vmem [resolvable:$true] %s18
      %24 = dma.hbm_to_vmem [thread:$0]  %s0, 512, %s19, [#allocation3], 128, 128, 8
    $region5: #{tpu_custom_call.1} parent=1 // pred_fallthru
      _
    // Predicated region
    $region6: #{tpu_custom_call.1} parent=1 // pred_check
      _
    $region7: #{tpu_custom_call.1} parent=1 // pred_check_branch
      %26 = sbr.rel (0) target = $region9
    $region8: #{tpu_custom_call.1} parent=1 // pred_region
      %s28 = ssub.s32 2048, 2048
      %29 = vsyncadd [#allocation6], %s28
      %s30 = sshll.u32 [#allocation5], 4
      %s31 = int_to_ptr.vmem [resolvable:$true] %s30
      %36 = dma.hbm_to_vmem [thread:$0]  %s1, 2048, %s31, [#allocation6], 128, 128, 8
    $region9: #{tpu_custom_call.1} parent=1 // pred_fallthru
      _
    // Predicated region
    $region10: #{tpu_custom_call.1} parent=1 // pred_check
      _
    $region11: #{tpu_custom_call.1} parent=1 // pred_check_branch
      %38 = sbr.rel (0) target = $region13
    $region12: #{tpu_custom_call.1} parent=1 // pred_region
      %s40 = ssub.s32 4096, 4096
      %41 = vsyncadd [#allocation6], %s40
      %s42 = sshll.u32 [#allocation7], 4
      %s43 = int_to_ptr.vmem [resolvable:$true] %s42
      %48 = dma.hbm_to_vmem [thread:$0]  %s2, 4096, %s43, [#allocation6], 256, 256, 16
    $region13: #{tpu_custom_call.1} parent=1 // pred_fallthru
      _
    // Predicated region
    $region14: #{tpu_custom_call.1} parent=1 // pred_check
      _
    $region15: #{tpu_custom_call.1} parent=1 // pred_check_branch
      %50 = sbr.rel (0) target = $region17
    $region16: #{tpu_custom_call.1} parent=1 // pred_region
      _
    $region17: #{tpu_custom_call.1} parent=1 // pred_fallthru
      _
    // Predicated region
    $region18: #{tpu_custom_call.1} parent=1 // pred_check
      _
    $region19: #{tpu_custom_call.1} parent=1 // pred_check_branch
      %52 = sbr.rel (0) target = $region21
    $region20: #{tpu_custom_call.1} parent=1 // pred_region
      _
    $region21: #{tpu_custom_call.1} parent=1 // pred_fallthru
      _
    // Predicated region
    $region22: #{tpu_custom_call.1} parent=1 // pred_check
      _
    $region23: #{tpu_custom_call.1} parent=1 // pred_check_branch
      %54 = sbr.rel (0) target = $region25
    $region24: #{tpu_custom_call.1} parent=1 // pred_region
      %55 = dma.done [#allocation3], 512
    $region25: #{tpu_custom_call.1} parent=1 // pred_fallthru
      _
    // Predicated region
    $region26: #{tpu_custom_call.1} parent=1 // pred_check
      _
    $region27: #{tpu_custom_call.1} parent=1 // pred_check_branch
      %57 = sbr.rel (0) target = $region29
    $region28: #{tpu_custom_call.1} parent=1 // pred_region
      %58 = dma.done [#allocation6], 2048
    $region29: #{tpu_custom_call.1} parent=1 // pred_fallthru
      _
    // Predicated region
    $region30: #{tpu_custom_call.1} parent=1 // pred_check
      _
    $region31: #{tpu_custom_call.1} parent=1 // pred_check_branch
      %60 = sbr.rel (0) target = $region33
    $region32: #{tpu_custom_call.1} parent=1 // pred_region
      %61 = dma.done [#allocation6], 4096
    $region33: #{tpu_custom_call.1} parent=1 // pred_fallthru
      _
    %v62 = vld [vmem:[#allocation2] sm:$0xff]
    %v63 = vld [vmem:[#allocation2 + $0x8] sm:$0xff]
    %v64 = vld [vmem:[#allocation2 + $0x10] sm:$0xff]
    %v65 = vld [vmem:[#allocation2 + $0x18] sm:$0xff]
    %v66 = vld [vmem:[#allocation5] sm:$0xff]
    %v67 = vld [vmem:[#allocation5 + $0x8] sm:$0xff]
    %v68 = vld [vmem:[#allocation5 + $0x10] sm:$0xff]
    %v69 = vld [vmem:[#allocation5 + $0x18] sm:$0xff]
    %v70 = vld [vmem:[#allocation5 + $0x20] sm:$0xff]
    %v71 = vld [vmem:[#allocation5 + $0x28] sm:$0xff]
    %v72 = vld [vmem:[#allocation5 + $0x30] sm:$0xff]
    %v73 = vld [vmem:[#allocation5 + $0x38] sm:$0xff]
    %v74 = vld [vmem:[#allocation5 + $0x40] sm:$0xff]
    %v75 = vld [vmem:[#allocation5 + $0x48] sm:$0xff]
    %v76 = vld [vmem:[#allocation5 + $0x50] sm:$0xff]
    %v77 = vld [vmem:[#allocation5 + $0x58] sm:$0xff]
    %v78 = vld [vmem:[#allocation5 + $0x60] sm:$0xff]
    %v79 = vld [vmem:[#allocation5 + $0x68] sm:$0xff]
    %v80 = vld [vmem:[#allocation5 + $0x70] sm:$0xff]
    %v81 = vld [vmem:[#allocation5 + $0x78] sm:$0xff]
    %82 = vmatprep.subr.mxu0 0.0
    %83 = vmatpush1.msra.mxu0 %v66
    %84 = vmatprep.subr.mxu0 0.0
    %85 = vmatpush1.msra.mxu0 %v67
    %86 = vmatprep.subr.mxu0 0.0
    %87 = vmatpush1.msra.mxu0 %v68
    %88 = vmatprep.subr.mxu0 0.0
    %89 = vmatpush1.msra.mxu0 %v69
    %90 = vmatprep.subr.mxu0 0.0
    %91 = vmatpush1.msra.mxu0 %v70
    %92 = vmatprep.subr.mxu0 0.0
    %93 = vmatpush1.msra.mxu0 %v71
    %94 = vmatprep.subr.mxu0 0.0
    %95 = vmatpush1.msra.mxu0 %v72
    %96 = vmatprep.subr.mxu0 0.0
    %97 = vmatpush1.msra.mxu0 %v73
    %98 = vmatprep.subr.mxu0 0.0
    %99 = vmatpush1.msra.mxu0 %v74
    %100 = vmatprep.subr.mxu0 0.0
    %101 = vmatpush1.msra.mxu0 %v75
    %102 = vmatprep.subr.mxu0 0.0
    %103 = vmatpush1.msra.mxu0 %v76
    %104 = vmatprep.subr.mxu0 0.0
    %105 = vmatpush1.msra.mxu0 %v77
    %106 = vmatprep.subr.mxu0 0.0
    %107 = vmatpush1.msra.mxu0 %v78
    %108 = vmatprep.subr.mxu0 0.0
    %109 = vmatpush1.msra.mxu0 %v79
    %110 = vmatprep.subr.mxu0 0.0
    %111 = vmatpush1.msra.mxu0 %v80
    %112 = vmatprep.subr.mxu0 0.0
    %113 = vmatpush1.msra.mxu0 %v81
    %114 = vmatprep.subr.mxu0 0.0
    %115 = vmatpush1.msra.mxu0 0.0
    %116 = vmatprep.subr.mxu0 0.0
    %117 = vmatpush1.msra.mxu0 0.0
    %118 = vmatprep.subr.mxu0 0.0
    %119 = vmatpush1.msra.mxu0 0.0
    %120 = vmatprep.subr.mxu0 0.0
    %121 = vmatpush1.msra.mxu0 0.0
    %122 = vmatprep.subr.mxu0 0.0
    %123 = vmatpush1.msra.mxu0 0.0
    %124 = vmatprep.subr.mxu0 0.0
    %125 = vmatpush1.msra.mxu0 0.0
    %126 = vmatprep.subr.mxu0 0.0
    %127 = vmatpush1.msra.mxu0 0.0
    %128 = vmatprep.subr.mxu0 0.0
    %129 = vmatpush1.msra.mxu0 0.0
    %130 = vmatprep.subr.mxu0 0.0
    %131 = vmatpush1.msra.mxu0 0.0
    %132 = vmatprep.subr.mxu0 0.0
    %133 = vmatpush1.msra.mxu0 0.0
    %134 = vmatprep.subr.mxu0 0.0
    %135 = vmatpush1.msra.mxu0 0.0
    %136 = vmatprep.subr.mxu0 0.0
    %137 = vmatpush1.msra.mxu0 0.0
    %138 = vmatprep.subr.mxu0 0.0
    %139 = vmatpush1.msra.mxu0 0.0
    %140 = vmatprep.subr.mxu0 0.0
    %141 = vmatpush1.msra.mxu0 0.0
    %142 = vmatprep.subr.mxu0 0.0
    %143 = vmatpush1.msra.mxu0 0.0
    %144 = vmatprep.subr.mxu0 0.0
    %145 = vmatpush1.msra.mxu0 0.0
    %146 = vmatprep.mubr.f32.mxu0 0.0
    %147 = vmatmul.mubr.f32.gmra.mrb[0].mxu0 %v62
    %v148 = vpop.f32.mrb[0].mxu0
    %v149 = vadd.f32 0.0, %v148
    %v150 = vpop.f32.mrb[0].mxu0
    %151 = vmatprep.mubr.f32.mxu0 0.0
    %152 = vmatmul.mubr.f32.gmra.mrb[0].mxu0 %v63
    %v153 = vpop.f32.mrb[0].mxu0
    %v154 = vadd.f32 0.0, %v153
    %v155 = vpop.f32.mrb[0].mxu0
    %156 = vmatprep.mubr.f32.mxu0 0.0
    %157 = vmatmul.mubr.f32.gmra.mrb[0].mxu0 %v64
    %v158 = vpop.f32.mrb[0].mxu0
    %v159 = vadd.f32 0.0, %v158
    %v160 = vpop.f32.mrb[0].mxu0
    %161 = vmatprep.mubr.f32.mxu0 0.0
    %162 = vmatmul.mubr.f32.gmra.mrb[0].mxu0 %v65
    %v163 = vpop.f32.mrb[0].mxu0
    %v164 = vadd.f32 0.0, %v163
    %v165 = vpop.f32.mrb[0].mxu0
    %166 = vdwg.mxu0
    %v167 = vmul.f32 %v62, %v62
    %v168 = vmul.f32 %v63, %v63
    %v169 = vmul.f32 %v64, %v64
    %v170 = vmul.f32 %v65, %v65
    %171 = vmatprep.subr.mxu0 0.0
    %172 = vmatpush1.msra.mxu0 %v66
    %173 = vmatprep.subr.mxu0 0.0
    %174 = vmatpush1.msra.mxu0 %v67
    %175 = vmatprep.subr.mxu0 0.0
    %176 = vmatpush1.msra.mxu0 %v68
    %177 = vmatprep.subr.mxu0 0.0
    %178 = vmatpush1.msra.mxu0 %v69
    %179 = vmatprep.subr.mxu0 0.0
    %180 = vmatpush1.msra.mxu0 %v70
    %181 = vmatprep.subr.mxu0 0.0
    %182 = vmatpush1.msra.mxu0 %v71
    %183 = vmatprep.subr.mxu0 0.0
    %184 = vmatpush1.msra.mxu0 %v72
    %185 = vmatprep.subr.mxu0 0.0
    %186 = vmatpush1.msra.mxu0 %v73
    %187 = vmatprep.subr.mxu0 0.0
    %188 = vmatpush1.msra.mxu0 %v74
    %189 = vmatprep.subr.mxu0 0.0
    %190 = vmatpush1.msra.mxu0 %v75
    %191 = vmatprep.subr.mxu0 0.0
    %192 = vmatpush1.msra.mxu0 %v76
    %193 = vmatprep.subr.mxu0 0.0
    %194 = vmatpush1.msra.mxu0 %v77
    %195 = vmatprep.subr.mxu0 0.0
    %196 = vmatpush1.msra.mxu0 %v78
    %197 = vmatprep.subr.mxu0 0.0
    %198 = vmatpush1.msra.mxu0 %v79
    %199 = vmatprep.subr.mxu0 0.0
    %200 = vmatpush1.msra.mxu0 %v80
    %201 = vmatprep.subr.mxu0 0.0
    %202 = vmatpush1.msra.mxu0 %v81
    %203 = vmatprep.subr.mxu0 0.0
    %204 = vmatpush1.msra.mxu0 0.0
    %205 = vmatprep.subr.mxu0 0.0
    %206 = vmatpush1.msra.mxu0 0.0
    %207 = vmatprep.subr.mxu0 0.0
    %208 = vmatpush1.msra.mxu0 0.0
    %209 = vmatprep.subr.mxu0 0.0
    %210 = vmatpush1.msra.mxu0 0.0
    %211 = vmatprep.subr.mxu0 0.0
    %212 = vmatpush1.msra.mxu0 0.0
    %213 = vmatprep.subr.mxu0 0.0
    %214 = vmatpush1.msra.mxu0 0.0
    %215 = vmatprep.subr.mxu0 0.0
    %216 = vmatpush1.msra.mxu0 0.0
    %217 = vmatprep.subr.mxu0 0.0
    %218 = vmatpush1.msra.mxu0 0.0
    %219 = vmatprep.subr.mxu0 0.0
    %220 = vmatpush1.msra.mxu0 0.0
    %221 = vmatprep.subr.mxu0 0.0
    %222 = vmatpush1.msra.mxu0 0.0
    %223 = vmatprep.subr.mxu0 0.0
    %224 = vmatpush1.msra.mxu0 0.0
    %225 = vmatprep.subr.mxu0 0.0
    %226 = vmatpush1.msra.mxu0 0.0
    %227 = vmatprep.subr.mxu0 0.0
    %228 = vmatpush1.msra.mxu0 0.0
    %229 = vmatprep.subr.mxu0 0.0
    %230 = vmatpush1.msra.mxu0 0.0
    %231 = vmatprep.subr.mxu0 0.0
    %232 = vmatpush1.msra.mxu0 0.0
    %233 = vmatprep.subr.mxu0 0.0
    %234 = vmatpush1.msra.mxu0 0.0
    %235 = vmatprep.mubr.f32.mxu0 0.0
    %236 = vmatmul.mubr.f32.gmra.mrb[0].mxu0 %v167
    %v237 = vpop.f32.mrb[0].mxu0
    %v238 = vadd.f32 0.0, %v237
    %v239 = vpop.f32.mrb[0].mxu0
    %240 = vmatprep.mubr.f32.mxu0 0.0
    %241 = vmatmul.mubr.f32.gmra.mrb[0].mxu0 %v168
    %v242 = vpop.f32.mrb[0].mxu0
    %v243 = vadd.f32 0.0, %v242
    %v244 = vpop.f32.mrb[0].mxu0
    %245 = vmatprep.mubr.f32.mxu0 0.0
    %246 = vmatmul.mubr.f32.gmra.mrb[0].mxu0 %v169
    %v247 = vpop.f32.mrb[0].mxu0
    %v248 = vadd.f32 0.0, %v247
    %v249 = vpop.f32.mrb[0].mxu0
    %250 = vmatprep.mubr.f32.mxu0 0.0
    %251 = vmatmul.mubr.f32.gmra.mrb[0].mxu0 %v170
    %v252 = vpop.f32.mrb[0].mxu0
    %v253 = vadd.f32 0.0, %v252
    %v254 = vpop.f32.mrb[0].mxu0
    %255 = vdwg.mxu0
    %v256 = vmul.f32 %v149, 0.03125
    %v257 = vmul.f32 %v154, 0.03125
    %v258 = vmul.f32 %v159, 0.03125
    %v259 = vmul.f32 %v164, 0.03125
    %v260 = vmul.f32 %v238, 0.03125
    %v261 = vmul.f32 %v243, 0.03125
    %v262 = vmul.f32 %v248, 0.03125
    %v263 = vmul.f32 %v253, 0.03125
    %v264 = vmul.f32 %v256, %v256
    %v265 = vmul.f32 %v257, %v257
    %v266 = vmul.f32 %v258, %v258
    %v267 = vmul.f32 %v259, %v259
    %v268 = vsub.f32 %v260, %v264
    %v269 = vsub.f32 %v261, %v265
    %v270 = vsub.f32 %v262, %v266
    %v271 = vsub.f32 %v263, %v267
    %v272 = vmax.f32 %v268, 0.0
    %v273 = vmax.f32 %v269, 0.0
    %v274 = vmax.f32 %v270, 0.0
    %v275 = vmax.f32 %v271, 0.0
    %v276 = vsub.f32 %v62, %v256
    %v277 = vsub.f32 %v63, %v257
    %v278 = vsub.f32 %v64, %v258
    %v279 = vsub.f32 %v65, %v259
    %v280 = vadd.f32 %v272, 1e-05
    %v281 = vadd.f32 %v273, 1e-05
    %v282 = vadd.f32 %v274, 1e-05
    %v283 = vadd.f32 %v275, 1e-05
    %v284 = vrsqrt.pop %v280
    %v285 = vrsqrt.pop %v281
    %v286 = vrsqrt.pop %v282
    %v287 = vrsqrt.pop %v283
    %v288 = vmul.f32 %v276, %v284
    %v289 = vmul.f32 %v277, %v285
    %v290 = vmul.f32 %v278, %v286
    %v291 = vmul.f32 %v279, %v287
    %v292 = vld [vmem:[#allocation7] sm:$0xff]
    %v293 = vld [vmem:[#allocation7 + $0x8] sm:$0xff]
    %v294 = vld [vmem:[#allocation7 + $0x10] sm:$0xff]
    %v295 = vld [vmem:[#allocation7 + $0x18] sm:$0xff]
    %v296 = vld [vmem:[#allocation7 + $0x20] sm:$0xff]
    %v297 = vld [vmem:[#allocation7 + $0x28] sm:$0xff]
    %v298 = vld [vmem:[#allocation7 + $0x30] sm:$0xff]
    %v299 = vld [vmem:[#allocation7 + $0x38] sm:$0xff]
    %v300 = vld [vmem:[#allocation7 + $0x40] sm:$0xff]
    %v301 = vld [vmem:[#allocation7 + $0x48] sm:$0xff]
    %v302 = vld [vmem:[#allocation7 + $0x50] sm:$0xff]
    %v303 = vld [vmem:[#allocation7 + $0x58] sm:$0xff]
    %v304 = vld [vmem:[#allocation7 + $0x60] sm:$0xff]
    %v305 = vld [vmem:[#allocation7 + $0x68] sm:$0xff]
    %v306 = vld [vmem:[#allocation7 + $0x70] sm:$0xff]
    %v307 = vld [vmem:[#allocation7 + $0x78] sm:$0xff]
    %v308 = vld [vmem:[#allocation7 + $0x80] sm:$0xff]
    %v309 = vld [vmem:[#allocation7 + $0x88] sm:$0xff]
    %v310 = vld [vmem:[#allocation7 + $0x90] sm:$0xff]
    %v311 = vld [vmem:[#allocation7 + $0x98] sm:$0xff]
    %v312 = vld [vmem:[#allocation7 + $0xa0] sm:$0xff]
    %v313 = vld [vmem:[#allocation7 + $0xa8] sm:$0xff]
    %v314 = vld [vmem:[#allocation7 + $0xb0] sm:$0xff]
    %v315 = vld [vmem:[#allocation7 + $0xb8] sm:$0xff]
    %v316 = vld [vmem:[#allocation7 + $0xc0] sm:$0xff]
    %v317 = vld [vmem:[#allocation7 + $0xc8] sm:$0xff]
    %v318 = vld [vmem:[#allocation7 + $0xd0] sm:$0xff]
    %v319 = vld [vmem:[#allocation7 + $0xd8] sm:$0xff]
    %v320 = vld [vmem:[#allocation7 + $0xe0] sm:$0xff]
    %v321 = vld [vmem:[#allocation7 + $0xe8] sm:$0xff]
    %v322 = vld [vmem:[#allocation7 + $0xf0] sm:$0xff]
    %v323 = vld [vmem:[#allocation7 + $0xf8] sm:$0xff]
    %324 = vmatprep.subr.mxu0 %v293
    %325 = vmatpush1.msra.mxu0 %v292
    %326 = vmatprep.subr.mxu0 %v295
    %327 = vmatpush1.msra.mxu0 %v294
    %328 = vmatprep.subr.mxu0 %v297
    %329 = vmatpush1.msra.mxu0 %v296
    %330 = vmatprep.subr.mxu0 %v299
    %331 = vmatpush1.msra.mxu0 %v298
    %332 = vmatprep.subr.mxu0 %v301
    %333 = vmatpush1.msra.mxu0 %v300
    %334 = vmatprep.subr.mxu0 %v303
    %335 = vmatpush1.msra.mxu0 %v302
    %336 = vmatprep.subr.mxu0 %v305
    %337 = vmatpush1.msra.mxu0 %v304
    %338 = vmatprep.subr.mxu0 %v307
    %339 = vmatpush1.msra.mxu0 %v306
    %340 = vmatprep.subr.mxu0 %v309
    %341 = vmatpush1.msra.mxu0 %v308
    %342 = vmatprep.subr.mxu0 %v311
    %343 = vmatpush1.msra.mxu0 %v310
    %344 = vmatprep.subr.mxu0 %v313
    %345 = vmatpush1.msra.mxu0 %v312
    %346 = vmatprep.subr.mxu0 %v315
    %347 = vmatpush1.msra.mxu0 %v314
    %348 = vmatprep.subr.mxu0 %v317
    %349 = vmatpush1.msra.mxu0 %v316
    %350 = vmatprep.subr.mxu0 %v319
    %351 = vmatpush1.msra.mxu0 %v318
    %352 = vmatprep.subr.mxu0 %v321
    %353 = vmatpush1.msra.mxu0 %v320
    %354 = vmatprep.subr.mxu0 %v323
    %355 = vmatpush1.msra.mxu0 %v322
    %356 = vmatprep.subr.mxu0 0.0
    %357 = vmatpush1.msra.mxu0 0.0
    %358 = vmatprep.subr.mxu0 0.0
    %359 = vmatpush1.msra.mxu0 0.0
    %360 = vmatprep.subr.mxu0 0.0
    %361 = vmatpush1.msra.mxu0 0.0
    %362 = vmatprep.subr.mxu0 0.0
    %363 = vmatpush1.msra.mxu0 0.0
    %364 = vmatprep.subr.mxu0 0.0
    %365 = vmatpush1.msra.mxu0 0.0
    %366 = vmatprep.subr.mxu0 0.0
    %367 = vmatpush1.msra.mxu0 0.0
    %368 = vmatprep.subr.mxu0 0.0
    %369 = vmatpush1.msra.mxu0 0.0
    %370 = vmatprep.subr.mxu0 0.0
    %371 = vmatpush1.msra.mxu0 0.0
    %372 = vmatprep.subr.mxu0 0.0
    %373 = vmatpush1.msra.mxu0 0.0
    %374 = vmatprep.subr.mxu0 0.0
    %375 = vmatpush1.msra.mxu0 0.0
    %376 = vmatprep.subr.mxu0 0.0
    %377 = vmatpush1.msra.mxu0 0.0
    %378 = vmatprep.subr.mxu0 0.0
    %379 = vmatpush1.msra.mxu0 0.0
    %380 = vmatprep.subr.mxu0 0.0
    %381 = vmatpush1.msra.mxu0 0.0
    %382 = vmatprep.subr.mxu0 0.0
    %383 = vmatpush1.msra.mxu0 0.0
    %384 = vmatprep.subr.mxu0 0.0
    %385 = vmatpush1.msra.mxu0 0.0
    %386 = vmatprep.subr.mxu0 0.0
    %387 = vmatpush1.msra.mxu0 0.0
    %388 = vmatprep.mubr.f32.mxu0 0.0
    %389 = vmatmul.mubr.f32.gmra.mrb[0].mxu0 %v288
    %v390 = vpop.f32.mrb[0].mxu0
    %v391 = vadd.f32 0.0, %v390
    %v392 = vpop.f32.mrb[0].mxu0
    %v393 = vadd.f32 0.0, %v392
    %394 = vmatprep.mubr.f32.mxu0 0.0
    %395 = vmatmul.mubr.f32.gmra.mrb[0].mxu0 %v289
    %v396 = vpop.f32.mrb[0].mxu0
    %v397 = vadd.f32 0.0, %v396
    %v398 = vpop.f32.mrb[0].mxu0
    %v399 = vadd.f32 0.0, %v398
    %400 = vmatprep.mubr.f32.mxu0 0.0
    %401 = vmatmul.mubr.f32.gmra.mrb[0].mxu0 %v290
    %v402 = vpop.f32.mrb[0].mxu0
    %v403 = vadd.f32 0.0, %v402
    %v404 = vpop.f32.mrb[0].mxu0
    %v405 = vadd.f32 0.0, %v404
    %406 = vmatprep.mubr.f32.mxu0 0.0
    %407 = vmatmul.mubr.f32.gmra.mrb[0].mxu0 %v291
    %v408 = vpop.f32.mrb[0].mxu0
    %v409 = vadd.f32 0.0, %v408
    %v410 = vpop.f32.mrb[0].mxu0
    %v411 = vadd.f32 0.0, %v410
    %412 = vdwg.mxu0
    %v413 = vld [vmem:[%s3] sm:$0x3]
    %v415 = vlaneseq
    %v416 = vshrl.u32 %v415, 7
    %v417 = vsub.s32 0, %v416
    %v418 = vrot.slane %v413, %v417
    %v419 = vlaneseq
    %v420 = vshrl.u32 %v419, 7
    %v421 = vsub.s32 1, %v420
    %v422 = vrot.slane %v413, %v421
    %v425 = vmul.f32 %v391, %v418
    %v426 = vmul.f32 %v393, %v422
    %v427 = vmul.f32 %v397, %v418
    %v428 = vmul.f32 %v399, %v422
    %v429 = vmul.f32 %v403, %v418
    %v430 = vmul.f32 %v405, %v422
    %v431 = vmul.f32 %v409, %v418
    %v432 = vmul.f32 %v411, %v422
    %v433 = vld [vmem:[%s4] sm:$0x3]
    %v435 = vlaneseq
    %v436 = vshrl.u32 %v435, 7
    %v437 = vsub.s32 0, %v436
    %v438 = vrot.slane %v433, %v437
    %v439 = vlaneseq
    %v440 = vshrl.u32 %v439, 7
    %v441 = vsub.s32 1, %v440
    %v442 = vrot.slane %v433, %v441
    %v445 = vadd.f32 %v425, %v438
    %v446 = vadd.f32 %v426, %v442
    %v447 = vadd.f32 %v427, %v438
    %v448 = vadd.f32 %v428, %v442
    %v449 = vadd.f32 %v429, %v438
    %v450 = vadd.f32 %v430, %v442
    %v451 = vadd.f32 %v431, %v438
    %v452 = vadd.f32 %v432, %v442
    %453 = vst [vmem:[#allocation8] sm:$0xff] %v445
    %454 = vst [vmem:[#allocation8 + $0x8] sm:$0xff] %v446
    %455 = vst [vmem:[#allocation8 + $0x10] sm:$0xff] %v447
    %456 = vst [vmem:[#allocation8 + $0x18] sm:$0xff] %v448
    %457 = vst [vmem:[#allocation8 + $0x20] sm:$0xff] %v449
    %458 = vst [vmem:[#allocation8 + $0x28] sm:$0xff] %v450
    %459 = vst [vmem:[#allocation8 + $0x30] sm:$0xff] %v451
    %460 = vst [vmem:[#allocation8 + $0x38] sm:$0xff] %v452
    // Predicated region
    $region34: #{tpu_custom_call.1} parent=1 // pred_check
      _
    $region35: #{tpu_custom_call.1} parent=1 // pred_check_branch
      %462 = sbr.rel (0) target = $region37
    $region36: #{tpu_custom_call.1} parent=1 // pred_region
      %s464 = ssub.s32 1024, 1024
      %465 = vsyncadd [#allocation4], %s464
      %s466 = sshll.u32 [#allocation8], 4
      %s467 = int_to_ptr.vmem [resolvable:$true] %s466
      %472 = dma.vmem_to_hbm [thread:$0]  %s467, 1024, %s5, [#allocation4], 256, 256, 16
    $region37: #{tpu_custom_call.1} parent=1 // pred_fallthru
      _
    // Predicated region
    $region38: #{tpu_custom_call.1} parent=1 // pred_check
      _
    $region39: #{tpu_custom_call.1} parent=1 // pred_check_branch
      %474 = sbr.rel (0) target = $region41
    $region40: #{tpu_custom_call.1} parent=1 // pred_region
      %475 = dma.done [#allocation4], 1024
    $region41: #{tpu_custom_call.1} parent=1 // pred_fallthru
      _
    %476 = vsyncpa [#allocation3], 1
    %477 = vsyncpa [#allocation6], 1
    %478 = vsyncpa [#allocation4], 1

</llo_original>
